<compile_context>
chip_gen: v5e
topology: v5e:2x2
jax: 0.10.0
libtpu: 0.0.40
codegen_flags: <defaults>
</compile_context>

<pallas_src>
import functools

import jax
import jax.numpy as jnp
from jax.experimental import pallas as pl
from jax.experimental.pallas import tpu as pltpu


# ----------------------------------------------------------------------------------
# In-kernel tile computation (shared by the resident and streamed kernels).
# ----------------------------------------------------------------------------------
def _compute_tile(win, w_refs, base, *, W, K, pad, dil, tHW, algo, compute_dtype):
    """Compute one (Cout, tHW) f32 output tile from a (Cp, tHW + halo) input window.

    `win` holds the flattened, zero-padded input so that tap (kh, kw) of output
    position j is win[:, j + dil*(kh*W + kw)].  Horizontal taps that wrapped into a
    neighbouring image row are zeroed with a per-column mask; vertical out-of-range
    taps hit the real zero padding.
    """
    # Hoisted edge masks: only K distinct horizontal offsets (one per kw).
    pcol = (base + jax.lax.broadcasted_iota(jnp.int32, (1, tHW), 1)) % W
    valid = {}
    for kw in range(K):
        off = (pad - kw) * dil
        if off != 0:
            valid[kw] = (pcol >= off) & (pcol < W + off)

    if algo == "folded":
        # Single stacked contraction: (Cout, K*K*Cp) @ (K*K*Cp, tHW).
        (wf2_ref,) = w_refs
        zero = jnp.zeros((), dtype=win.dtype)
        taps = []
        for kh in range(K):
            for kw in range(K):
                s = dil * (kh * W + kw)
                tap = win[:, s:s + tHW]                      # (Cp, tHW)
                if kw in valid:
                    tap = jnp.where(valid[kw], tap, zero)
                taps.append(tap)
        stacked = jnp.concatenate(taps, axis=0)              # (K*K*Cp, tHW), aligned
        return jnp.dot(wf2_ref[...], stacked, preferred_element_type=jnp.float32)

    # Two-stage: depthwise on the VPU (f32 accumulation), then one pointwise matmul.
    dwk_ref, pw_ref = w_refs                                  # (K*K, Cp, 1) f32, (Cout, Cp)
    Cp = win.shape[0]
    dwy = jnp.zeros((Cp, tHW), dtype=jnp.float32)
    for kh in range(K):
        for kw in range(K):
            t = kh * K + kw
            s = dil * (kh * W + kw)
            tap = win[:, s:s + tHW].astype(jnp.float32)
            if kw in valid:
                tap = jnp.where(valid[kw], tap, 0.0)
            dwy = dwy + dwk_ref[t] * tap                      # (Cp,1) broadcast on lanes
    return jnp.dot(pw_ref[...], dwy.astype(compute_dtype),
                   preferred_element_type=jnp.float32)


# ----------------------------------------------------------------------------------
# Kernel bodies.
# ----------------------------------------------------------------------------------
def _resident_kernel(*refs, W, K, pad, dil, tHW, halo, algo, compute_dtype):
    """grid = (batch, spatial_tile); whole padded image resident per batch element."""
    xf_ref, out_ref = refs[0], refs[-1]
    w_refs = refs[1:-1]
    i = pl.program_id(1)
    base = pl.multiple_of(i * tHW, 128)
    win = xf_ref[0, :, pl.ds(base, tHW + halo)]               # (Cp, tHW + halo)
    acc = _compute_tile(win, w_refs, base, W=W, K=K, pad=pad, dil=dil, tHW=tHW,
                        algo=algo, compute_dtype=compute_dtype)
    out_ref[0] = acc.astype(out_ref.dtype)


def _streamed_kernel(*refs, W, K, pad, dil, tHW, halo, algo, compute_dtype):
    """grid = (batch, spatial_tile); image stays in HBM, halo windows are manually
    double-buffered with async copies (input is never whole-image resident)."""
    xf_hbm, out_ref, xbuf, sem = refs[0], refs[-3], refs[-2], refs[-1]
    w_refs = refs[1:-3]
    b = pl.program_id(0)
    i = pl.program_id(1)
    S = pl.num_programs(1)
    Wn = tHW + halo

    def start_fetch(step, slot):
        pltpu.make_async_copy(
            xf_hbm.at[b, :, pl.ds(step * tHW, Wn)],
            xbuf.at[slot], sem.at[slot]).start()

    # Prime the pipeline at the first spatial tile of each batch element (no
    # cross-batch prefetch, so the batch axis can stay "parallel" / core-splittable).
    @pl.when(i == 0)
    def _():
        start_fetch(0, 0)

    slot = i % 2
    # Wait for this step's window (dummy src: only dst shape + semaphore matter).
    pltpu.make_async_copy(xf_hbm.at[b, :, pl.ds(0, Wn)], xbuf.at[slot],
                          sem.at[slot]).wait()

    # Prefetch the next window while this one is consumed.
    @pl.when(i + 1 < S)
    def _():
        start_fetch(i + 1, 1 - slot)

    base = pl.multiple_of(i * tHW, 128)
    win = xbuf[slot]                                          # (Cp, tHW + halo)
    acc = _compute_tile(win, w_refs, base, W=W, K=K, pad=pad, dil=dil, tHW=tHW,
                        algo=algo, compute_dtype=compute_dtype)
    out_ref[0] = acc.astype(out_ref.dtype)


# ----------------------------------------------------------------------------------
# Wrapper.
# ----------------------------------------------------------------------------------
def _vmem_capacity_bytes():
    try:
        cap = getattr(pltpu.get_tpu_info(), "vmem_capacity_bytes", None)
        if cap:
            return int(cap)
    except Exception:
        pass
    return 64 << 20          # conservative (v7x-sized) fallback


def _pick_spatial_tile(HW, C, Cout, target=2048):
    """Multiple-of-128 spatial tile; keep the largest (C/Cout, tHW) f32 temporary
    around ~1 MiB so traced intermediates stay clear of VMEM / spill pressure."""
    budget = (1 << 20) // (4 * max(C, Cout, 1))
    t = max(128, (min(target, budget) // 128) * 128)
    hw128 = ((HW + 127) // 128) * 128
    return min(t, hw128)


def depthwise_separable_conv(x_nchw, dw_weight, pw_weight, *, kernel_size=3, stride=1,
                             dilation=1, spatial_tile=None, compute_dtype=None,
                             algo="auto", input_mode="auto"):
    """Forward pass matching the PyTorch module (stride=1, no bias on either conv).

    x_nchw    : (N, Cin, H, W)
    dw_weight : (Cin, 1, K, K)     -- nn.Conv2d(nin, nin, k, groups=nin, bias=False).weight
    pw_weight : (Cout, Cin, 1, 1)  -- nn.Conv2d(nin, nout, 1, bias=False).weight
    compute_dtype : e.g. jnp.bfloat16 on v6e/v7x (boundary cast; f32 accumulation kept);
                    None = input dtype (use this on v5e / for strict f32 validation).
    algo      : "auto" | "folded" | "two_stage"
    input_mode: "auto" | "resident" | "streamed"
    returns   : (N, Cout, H, W)
    """
    N, C, H, W = x_nchw.shape
    K = int(kernel_size)
    assert K % 2 == 1, "only odd kernel sizes ('same' padding) are supported"
    assert stride == 1, "stride != 1 not implemented"   # TODO(synk): strided depthwise
    pad = (K - 1) // 2
    dil = int(dilation)
    Cout = pw_weight.shape[0]
    assert dw_weight.shape == (C, 1, K, K), dw_weight.shape
    assert pw_weight.shape == (Cout, C, 1, 1), pw_weight.shape

    out_dtype = x_nchw.dtype
    compute_dtype = jnp.dtype(compute_dtype if compute_dtype is not None else out_dtype)
    cbytes = compute_dtype.itemsize
    obytes = jnp.dtype(out_dtype).itemsize

    HW = H * W
    Cp = ((C + 7) // 8) * 8             # sublane-align channels (aligned concat / MXU)
    edge = dil * pad * (W + 1)          # zero pad at each end of the flattened axis
    halo = 2 * edge                     # == dil*(K-1)*(W+1): max flattened tap shift

    if spatial_tile is None:
        spatial_tile = _pick_spatial_tile(HW, C, Cout)
    tHW = int(spatial_tile)
    assert tHW % 128 == 0 and tHW >= 128, "spatial_tile must be a multiple of 128"
    HW_pad = pl.cdiv(HW, tHW) * tHW     # lane-dense stores: pad HW, crop afterwards
    S = HW_pad // tHW
    Lflat = HW_pad + halo

    if algo == "auto":
        # Folding depthwise into pointwise inflates MXU flops by K^2; only worth it
        # when C is too small to feed the MXU contraction on its own.
        algo = "two_stage" if C >= 64 else "folded"
    assert algo in ("folded", "two_stage"), algo

    # ---- layout glue (cheap, no NCHW<->NHWC transposes) ----
    # Flatten (H, W), cast at the boundary (bf16 halves HBM/VMEM traffic), pad the
    # channel dim to Cp and zero-pad the flattened axis once so that every conv tap
    # is a uniform static lane-shift of one window.
    xf = jnp.pad(x_nchw.reshape(N, C, HW).astype(compute_dtype),
                 ((0, 0), (0, Cp - C), (edge, edge + (HW_pad - HW))))

    dw = dw_weight[:, 0].astype(jnp.float32)                      # (C, K, K)
    pw = pw_weight[:, :, 0, 0].astype(jnp.float32)                # (Cout, C)
    if Cp != C:
        dw = jnp.pad(dw, ((0, Cp - C), (0, 0), (0, 0)))
        pw = jnp.pad(pw, ((0, 0), (0, Cp - C)))

    if algo == "folded":
        # wf2[o, t*Cp + c] = pw[o, c] * dw[c, kh, kw],  t = kh*K + kw  -> one stacked dot.
        dwt = jnp.transpose(dw, (1, 2, 0)).reshape(K * K, 1, Cp)   # [t, 1, c]
        wf2 = jnp.transpose(pw[None, :, :] * dwt, (1, 0, 2))       # (Cout, K*K, Cp)
        wf2 = wf2.reshape(Cout, K * K * Cp).astype(compute_dtype)
        weights = (wf2,)
        weight_specs = [pl.BlockSpec((Cout, K * K * Cp), lambda b, i: (0, 0))]
        wbytes = wf2.size * cbytes
        temp_bytes = K * K * Cp * tHW * cbytes + Cout * tHW * 4
        flops = 2 * N * HW_pad * (K * K * Cp) * Cout
    else:
        dwk = jnp.transpose(dw, (1, 2, 0)).reshape(K * K, Cp, 1)   # f32 per-channel taps
        pwc = pw.astype(compute_dtype)                             # (Cout, Cp)
        weights = (dwk, pwc)
        weight_specs = [pl.BlockSpec((K * K, Cp, 1), lambda b, i: (0, 0, 0)),
                        pl.BlockSpec((Cout, Cp), lambda b, i: (0, 0))]
        wbytes = dwk.size * 4 + pwc.size * cbytes
        temp_bytes = 2 * Cp * tHW * 4 + Cout * tHW * 4
        flops = 2 * N * HW_pad * Cp * (K * K + Cout)

    if input_mode == "auto":
        # Whole-image residency only when small; otherwise stream halo windows so the
        # VMEM footprint stays bounded (mandatory for v7x's 64 MiB / large images).
        input_mode = "resident" if 2 * Cp * Lflat * cbytes <= (8 << 20) else "streamed"
    assert input_mode in ("resident", "streamed"), input_mode

    kern_kwargs = dict(W=W, K=K, pad=pad, dil=dil, tHW=tHW, halo=halo, algo=algo,
                       compute_dtype=compute_dtype)
    out_specs = pl.BlockSpec((1, Cout, tHW), lambda b, i: (b, 0, i))

    if input_mode == "resident":
        kernel = functools.partial(_resident_kernel, **kern_kwargs)
        in_specs = [pl.BlockSpec((1, Cp, Lflat), lambda b, i: (b, 0, 0))] + weight_specs
        scratch = []
        dims = ("parallel", "parallel")
        in_bytes = 2 * Cp * Lflat * cbytes
    else:
        kernel = functools.partial(_streamed_kernel, **kern_kwargs)
        in_specs = [pl.BlockSpec(memory_space=pl.ANY)] + weight_specs
        scratch = [pltpu.VMEM((2, Cp, tHW + halo), compute_dtype),
                   pltpu.SemaphoreType.DMA((2,))]
        # Manual per-batch prefetch => keep the spatial axis in-order ("arbitrary");
        # the batch axis stays "parallel" (safe: no cross-batch prefetch).
        dims = ("parallel", "arbitrary")
        in_bytes = 2 * Cp * (tHW + halo) * cbytes

    vmem_need = in_bytes + 2 * Cout * tHW * obytes + 2 * wbytes + temp_bytes + (4 << 20)
    cap = _vmem_capacity_bytes()
    vmem_limit = int(min(max(vmem_need, 32 << 20), max(32 << 20, cap - (16 << 20))))

    bytes_accessed = int(xf.size * cbytes + wbytes + N * Cout * HW_pad * obytes)

    out_flat = pl.pallas_call(
        kernel,
        out_shape=jax.ShapeDtypeStruct((N, Cout, HW_pad), out_dtype),
        grid_spec=pltpu.PrefetchScalarGridSpec(
            num_scalar_prefetch=0,
            grid=(N, S),
            in_specs=in_specs,
            out_specs=out_specs,
            scratch_shapes=scratch),
        compiler_params=pltpu.CompilerParams(
            dimension_semantics=dims,
            vmem_limit_bytes=vmem_limit),
        cost_estimate=pl.CostEstimate(flops=flops, transcendentals=0,
                                      bytes_accessed=bytes_accessed),
    )(xf, *weights)

    if HW_pad != HW:
        out_flat = out_flat[:, :, :HW]
    # (N, Cout, H*W) -> (N, Cout, H, W): already NCHW, free metadata reshape.
    return out_flat.reshape(N, Cout, H, W)


# ----------------------------------------------------------------------------------
# Pure-JAX reference (mirrors nn.Conv2d semantics, bias=False).
# ----------------------------------------------------------------------------------
def _reference(x_nchw, dw_weight, pw_weight, *, kernel_size=3, dilation=1):
    C = x_nchw.shape[1]
    p = (kernel_size - 1) // 2 * dilation
    y = jax.lax.conv_general_dilated(
        x_nchw, dw_weight, window_strides=(1, 1),
        padding=((p, p), (p, p)), rhs_dilation=(dilation, dilation),
        dimension_numbers=("NCHW", "OIHW", "NCHW"), feature_group_count=C)
    y = jax.lax.conv_general_dilated(
        y, pw_weight, window_strides=(1, 1), padding=((0, 0), (0, 0)),
        dimension_numbers=("NCHW", "OIHW", "NCHW"))
    return y


if __name__ == "__main__":
    # Small shapes: batch=2, nin=4, nout=8, spatial=16x16, kernel=3.
    N, nin, nout, H, W, K = 2, 4, 8, 16, 16, 3

    key = jax.random.PRNGKey(0)
    kx, kd, kp, kx2 = jax.random.split(key, 4)
    x = jax.random.normal(kx, (N, nin, H, W), dtype=jnp.float32)
    dw_w = jax.random.normal(kd, (nin, 1, K, K), dtype=jnp.float32) * 0.1
    pw_w = jax.random.normal(kp, (nout, nin, 1, 1), dtype=jnp.float32) * 0.1

    ref = jax.block_until_ready(_reference(x, dw_w, pw_w, kernel_size=K))

    # 1) Default small-C path: folded single stacked dot, resident input, 2 spatial tiles.
    out = jax.block_until_ready(
        depthwise_separable_conv(x, dw_w, pw_w, kernel_size=K, spatial_tile=128))
    assert out.shape == (N, nout, H, W), out.shape
    assert jnp.allclose(out, ref, atol=1e-4, rtol=1e-4), float(jnp.max(jnp.abs(out - ref)))

    # 2) Streamed input mode (manual halo-window double buffering — the big-image path).
    out_s = jax.block_until_ready(
        depthwise_separable_conv(x, dw_w, pw_w, kernel_size=K, spatial_tile=128,
                                 input_mode="streamed"))
    assert jnp.allclose(out_s, ref, atol=1e-4, rtol=1e-4), float(jnp.max(jnp.abs(out_s - ref)))

    # 3) Two-stage algorithm (VPU depthwise + one pointwise matmul — the large-C path).
    out_t = jax.block_until_ready(
        depthwise_separable_conv(x, dw_w, pw_w, kernel_size=K, spatial_tile=128,
                                 algo="two_stage"))
    assert jnp.allclose(out_t, ref, atol=1e-4, rtol=1e-4), float(jnp.max(jnp.abs(out_t - ref)))

    # 4) bf16 boundary cast (what you'd use on v6e/v7x), auto tile pick; loose tolerance.
    out_b = jax.block_until_ready(
        depthwise_separable_conv(x, dw_w, pw_w, kernel_size=K,
                                 compute_dtype=jnp.bfloat16))
    assert float(jnp.max(jnp.abs(out_b - ref))) < 0.1

    # 5) H*W not a multiple of 128: pad-to-tile + crop path.
    x2 = jax.random.normal(kx2, (N, nin, 12, 20), dtype=jnp.float32)
    ref2 = jax.block_until_ready(_reference(x2, dw_w, pw_w, kernel_size=K))
    out2 = jax.block_until_ready(
        depthwise_separable_conv(x2, dw_w, pw_w, kernel_size=K, spatial_tile=128))
    assert out2.shape == ref2.shape, (out2.shape, ref2.shape)
    assert jnp.allclose(out2, ref2, atol=1e-4, rtol=1e-4), float(jnp.max(jnp.abs(out2 - ref2)))

    print("KERNEL_OK")
</pallas_src>

<mosaic_0001>
module attributes {stable_mosaic.version = 11 : i64} {
  func.func @_resident_kernel(%arg0: i32, %arg1: i32, %arg2: memref<1x8x290xf32, #tpu.memory_space<vmem>>, %arg3: memref<8x72xf32, #tpu.memory_space<vmem>>, %arg4: memref<1x8x128xf32, #tpu.memory_space<vmem>>) attributes {dimension_semantics = [#tpu.dimension_semantics<parallel>, #tpu.dimension_semantics<parallel>], iteration_bounds = array<i64: 2, 2>, scalar_prefetch = 0 : i64, scratch_operands = 0 : i64, tpu.core_type = #tpu.core_type<tc>, window_params = [{transform_indices = @transform_0, window_bounds = array<i64: 1, 8, 290>}, {pipeline_mode = #tpu.pipeline_mode<synchronous>, transform_indices = @transform_1, window_bounds = array<i64: 8, 72>}, {transform_indices = @transform_2, window_bounds = array<i64: 1, 8, 128>}]} {
    %c128_i32 = arith.constant 128 : i32
    %0 = arith.muli %arg1, %c128_i32 : i32
    %1 = tpu.assume_multiple %0, 128 : i32
    %c0 = arith.constant 0 : index
    %c0_0 = arith.constant 0 : index
    %2 = arith.index_cast %1 : i32 to index
    %3 = vector.load %arg2[%c0, %c0_0, %2] : memref<1x8x290xf32, #tpu.memory_space<vmem>>, vector<1x8x162xf32>
    %4 = vector.shape_cast %3 : vector<1x8x162xf32> to vector<8x162xf32>
    %5 = tpu.iota {dimensions = array<i32: 1>} : vector<1x128xi32>
    %6 = vector.broadcast %1 : i32 to vector<1x128xi32>
    %7 = arith.addi %6, %5 : vector<1x128xi32>
    %c16_i32 = arith.constant 16 : i32
    %c0_i32 = arith.constant 0 : i32
    %8 = arith.cmpi eq, %c16_i32, %c0_i32 : i32
    %c1_i32 = arith.constant 1 : i32
    %9 = arith.select %8, %c1_i32, %c16_i32 : i32
    %10 = vector.broadcast %9 : i32 to vector<1x128xi32>
    %11 = arith.remsi %7, %10 : vector<1x128xi32>
    %c0_i32_1 = arith.constant 0 : i32
    %12 = vector.broadcast %c0_i32_1 : i32 to vector<1x128xi32>
    %13 = arith.cmpi ne, %11, %12 : vector<1x128xi32>
    %c0_i32_2 = arith.constant 0 : i32
    %14 = vector.broadcast %c0_i32_2 : i32 to vector<1x128xi32>
    %15 = arith.cmpi slt, %11, %14 : vector<1x128xi32>
    %c0_i32_3 = arith.constant 0 : i32
    %16 = arith.cmpi slt, %9, %c0_i32_3 : i32
    %17 = vector.broadcast %16 : i1 to vector<1x128xi1>
    %18 = vector.broadcast %17 : vector<1x128xi1> to vector<1x128xi1>
    %19 = arith.xori %15, %18 : vector<1x128xi1>
    %20 = arith.andi %19, %13 : vector<1x128xi1>
    %21 = vector.broadcast %9 : i32 to vector<1x128xi32>
    %22 = arith.addi %11, %21 : vector<1x128xi32>
    %23 = arith.select %20, %22, %11 : vector<1x128xi1>, vector<1x128xi32>
    %c1_i32_4 = arith.constant 1 : i32
    %24 = vector.broadcast %c1_i32_4 : i32 to vector<1x128xi32>
    %25 = arith.cmpi sge, %23, %24 : vector<1x128xi32>
    %c17_i32 = arith.constant 17 : i32
    %26 = vector.broadcast %c17_i32 : i32 to vector<1x128xi32>
    %27 = arith.cmpi slt, %23, %26 : vector<1x128xi32>
    %28 = arith.andi %25, %27 : vector<1x128xi1>
    %c-1_i32 = arith.constant -1 : i32
    %29 = vector.broadcast %c-1_i32 : i32 to vector<1x128xi32>
    %30 = arith.cmpi sge, %23, %29 : vector<1x128xi32>
    %c15_i32 = arith.constant 15 : i32
    %31 = vector.broadcast %c15_i32 : i32 to vector<1x128xi32>
    %32 = arith.cmpi slt, %23, %31 : vector<1x128xi32>
    %33 = arith.andi %30, %32 : vector<1x128xi1>
    %34 = vector.extract_strided_slice %4 {offsets = [0, 0], sizes = [8, 128], strides = [1, 1]} : vector<8x162xf32> to vector<8x128xf32>
    %cst = arith.constant 0.000000e+00 : f32
    %35 = vector.shape_cast %28 : vector<1x128xi1> to vector<1x128xi1>
    %36 = vector.broadcast %35 : vector<1x128xi1> to vector<8x128xi1>
    %37 = vector.broadcast %cst : f32 to vector<8x128xf32>
    %38 = arith.select %36, %34, %37 : vector<8x128xi1>, vector<8x128xf32>
    %39 = vector.extract_strided_slice %4 {offsets = [0, 1], sizes = [8, 128], strides = [1, 1]} : vector<8x162xf32> to vector<8x128xf32>
    %40 = vector.extract_strided_slice %4 {offsets = [0, 2], sizes = [8, 128], strides = [1, 1]} : vector<8x162xf32> to vector<8x128xf32>
    %cst_5 = arith.constant 0.000000e+00 : f32
    %41 = vector.shape_cast %33 : vector<1x128xi1> to vector<1x128xi1>
    %42 = vector.broadcast %41 : vector<1x128xi1> to vector<8x128xi1>
    %43 = vector.broadcast %cst_5 : f32 to vector<8x128xf32>
    %44 = arith.select %42, %40, %43 : vector<8x128xi1>, vector<8x128xf32>
    %45 = vector.extract_strided_slice %4 {offsets = [0, 16], sizes = [8, 128], strides = [1, 1]} : vector<8x162xf32> to vector<8x128xf32>
    %cst_6 = arith.constant 0.000000e+00 : f32
    %46 = vector.shape_cast %28 : vector<1x128xi1> to vector<1x128xi1>
    %47 = vector.broadcast %46 : vector<1x128xi1> to vector<8x128xi1>
    %48 = vector.broadcast %cst_6 : f32 to vector<8x128xf32>
    %49 = arith.select %47, %45, %48 : vector<8x128xi1>, vector<8x128xf32>
    %50 = vector.extract_strided_slice %4 {offsets = [0, 17], sizes = [8, 128], strides = [1, 1]} : vector<8x162xf32> to vector<8x128xf32>
    %51 = vector.extract_strided_slice %4 {offsets = [0, 18], sizes = [8, 128], strides = [1, 1]} : vector<8x162xf32> to vector<8x128xf32>
    %cst_7 = arith.constant 0.000000e+00 : f32
    %52 = vector.shape_cast %33 : vector<1x128xi1> to vector<1x128xi1>
    %53 = vector.broadcast %52 : vector<1x128xi1> to vector<8x128xi1>
    %54 = vector.broadcast %cst_7 : f32 to vector<8x128xf32>
    %55 = arith.select %53, %51, %54 : vector<8x128xi1>, vector<8x128xf32>
    %56 = vector.extract_strided_slice %4 {offsets = [0, 32], sizes = [8, 128], strides = [1, 1]} : vector<8x162xf32> to vector<8x128xf32>
    %cst_8 = arith.constant 0.000000e+00 : f32
    %57 = vector.shape_cast %28 : vector<1x128xi1> to vector<1x128xi1>
    %58 = vector.broadcast %57 : vector<1x128xi1> to vector<8x128xi1>
    %59 = vector.broadcast %cst_8 : f32 to vector<8x128xf32>
    %60 = arith.select %58, %56, %59 : vector<8x128xi1>, vector<8x128xf32>
    %61 = vector.extract_strided_slice %4 {offsets = [0, 33], sizes = [8, 128], strides = [1, 1]} : vector<8x162xf32> to vector<8x128xf32>
    %62 = vector.extract_strided_slice %4 {offsets = [0, 34], sizes = [8, 128], strides = [1, 1]} : vector<8x162xf32> to vector<8x128xf32>
    %cst_9 = arith.constant 0.000000e+00 : f32
    %63 = vector.shape_cast %33 : vector<1x128xi1> to vector<1x128xi1>
    %64 = vector.broadcast %63 : vector<1x128xi1> to vector<8x128xi1>
    %65 = vector.broadcast %cst_9 : f32 to vector<8x128xf32>
    %66 = arith.select %64, %62, %65 : vector<8x128xi1>, vector<8x128xf32>
    %67 = tpu.concatenate %38, %39, %44, %49, %50, %55, %60, %61, %66 in 0 : vector<8x128xf32>, vector<8x128xf32>, vector<8x128xf32>, vector<8x128xf32>, vector<8x128xf32>, vector<8x128xf32>, vector<8x128xf32>, vector<8x128xf32>, vector<8x128xf32> -> vector<72x128xf32>
    %c0_10 = arith.constant 0 : index
    %c0_11 = arith.constant 0 : index
    %68 = vector.load %arg3[%c0_10, %c0_11] : memref<8x72xf32, #tpu.memory_space<vmem>>, vector<8x72xf32>
    %cst_12 = arith.constant dense<0.000000e+00> : vector<8x128xf32>
    %69 = tpu.matmul %68, %67, %cst_12 {dimension_numbers = #tpu.dot_dimension_numbers<[1], [0], [0], [1], [0, 0, 1, 1], [], []>} : vector<8x72xf32>, vector<72x128xf32>, vector<8x128xf32> -> vector<8x128xf32>
    %c0_13 = arith.constant 0 : index
    %c0_14 = arith.constant 0 : index
    %c0_15 = arith.constant 0 : index
    %70 = vector.load %arg4[%c0_13, %c0_14, %c0_15] : memref<1x8x128xf32, #tpu.memory_space<vmem>>, vector<1x8x128xf32>
    %71 = vector.shape_cast %70 : vector<1x8x128xf32> to vector<8x128xf32>
    %72 = vector.shape_cast %69 : vector<8x128xf32> to vector<1x8x128xf32>
    tpu.vector_store %arg4[%c0_13, %c0_14, %c0_15], %72 {strides = array<i32>} : memref<1x8x128xf32, #tpu.memory_space<vmem>>, vector<1x8x128xf32>,
    return
  }
  func.func @transform_0(%arg0: i32, %arg1: i32) -> (i32, i32, i32) {
    %c0_i32 = arith.constant 0 : i32
    %c0_i32_0 = arith.constant 0 : i32
    %c0_i32_1 = arith.constant 0 : i32
    return %arg0, %c0_i32, %c0_i32_0 : i32, i32, i32
  }
  func.func @transform_1(%arg0: i32, %arg1: i32) -> (i32, i32) {
    %c0_i32 = arith.constant 0 : i32
    %c0_i32_0 = arith.constant 0 : i32
    %c0_i32_1 = arith.constant 0 : i32
    return %c0_i32, %c0_i32_0 : i32, i32
  }
  func.func @transform_2(%arg0: i32, %arg1: i32) -> (i32, i32, i32) {
    %c0_i32 = arith.constant 0 : i32
    %c0_i32_0 = arith.constant 0 : i32
    return %arg0, %c0_i32, %arg1 : i32, i32, i32
  }
}

</mosaic_0001>

<llo_original>
// kernel: tpu_custom_call.1
$region0: #{tpu_custom_call.1}
  #allocation0 [shape = 'u32[]', space=smem, size = 0x4, offset = 0x4, fixed_abs, tag = 'smem constant byte address 0x4 - core index']
  #allocation1 [shape = 'u32[72,128]{1,0:T(1,128)}', space=vmem, size = 0x9000, scoped, tag = 'internal scratch']
  %s0 = inlined_call_operand.hbm [shape: f32[2,8,290], index: 0, kind: input, shape index: {}]
  %s1 = inlined_call_operand.hbm [shape: f32[8,72], index: 1, kind: input, shape index: {}]
  %s2 = inlined_call_operand.hbm [shape: f32[2,8,256], index: 2, kind: output, shape index: {}]
  %s3 = sld [smem:[#allocation0]]
  $region49: #{tpu_custom_call.1} parent=0
    _
  %s5 = ssub.s32 1, %s3
  %s6 = scalar_select 0, %s5, %s3
  $region1: #{tpu_custom_call.1} parent=0
    #allocation2 [shape = 'u8[24576]{0}', space=vmem, size = 0x6000, scoped, tag = 'input window, operand 0']
    #allocation3 [shape = 's32[2]{0}', space=sflag, size = 0x8, scoped, tag = 'scoped memory for tpu_custom_call.1']
    #allocation4 [shape = 's32[2]{0}', space=sflag, size = 0x8, scoped, tag = 'scoped memory for tpu_custom_call.1']
    #allocation5 [shape = 'u8[4096]{0}', space=vmem, size = 0x1000, scoped, tag = 'input window, operand 1, single buffered']
    #allocation6 [shape = 's32[1]{0}', space=sflag, size = 0x4, scoped, tag = 'scoped memory for tpu_custom_call.1']
    #allocation7 [shape = 'u8[8192]{0}', space=vmem, size = 0x2000, scoped, tag = 'output window, operand 0']
    %7 = vsyncpa [#allocation3], 0
    %s8 = scalar_lea.sflag [#allocation3], 1
    %9 = vsyncpa %s8, 0
    %10 = vsyncpa [#allocation6], 0
    %11 = vsyncpa [#allocation4], 0
    %s12 = scalar_lea.sflag [#allocation4], 1
    %13 = vsyncpa %s12, 0
    loop: start=0, step=1, limit=6
    $region2: #{tpu_custom_call.1} parent=1 // loop_pre_header
      _
    $region3: #{tpu_custom_call.1} parent=1 // loop_header
      %s15 = sphi 0, %s19
      %p16 = scmp.ge.s32.totalorder %s15, 6
      %s22 = sphi 0, %s34
      %s23 = sphi 0, %s30
      %s24 = sphi 0, %s22
      %s25 = sphi 0, %s23
      %s26 = sphi 0, %s24
      %s27 = sphi 0, %s25
      %s37 = sphi 0, %s39
      %s40 = sphi 0, %s37
      %s41 = sphi 0, %s40
      %s57 = sphi 0, %s41
      %s61 = sphi 0, %s61
      %s63 = sphi 0, %s61
      %s64 = sphi 0, %s63
      %s78 = sphi 0, %s64
      %s86 = sphi 0, %s88
      %s89 = sphi 0, %s86
      %s90 = sphi 0, %s89
      %s106 = sphi 0, %s90
    $region4: #{tpu_custom_call.1} parent=1 // loop_header_branch
      %18 = sbr.rel (%p16) target = $region8
    $region5: #{tpu_custom_call.1} parent=1 // loop_body
      %s20 = ssub.s32 %s15, 1
      %s21 = ssub.s32 %s15, 2
      %s28 = sadd.s32 1, %s23
      %p29 = scmp.ge.s32.totalorder %s28, 2
      %s30 = scalar_select %p29, 0, %s28
      %s31 = sadd.s32 1, %s22
      %s32 = scalar_select %p29, %s31, %s22
      %p33 = scmp.ge.s32.totalorder %s32, 2
      %s34 = scalar_select %p33, 0, %s32
      %s35 = ssub.s32 %s22, %s34
      %p36 = scmp.eq.s32.totalorder %s35, 0
      %s38 = sadd.s32 %s37, 1
      %s39 = scalar_select %p36, %s37, %s38
      %p42 = pneg %p36
      %p43 = scmp.eq.s32.totalorder %s15, 3
      %p44 = por %p42, %p43
      %p45 = scmp.ne.s32.totalorder %s37, %s40
      %p46 = scmp.eq.s32.totalorder %s15, 0
      %p47 = por %p45, %p46
      %p48 = scmp.ne.s32.totalorder %s37, %s40
      %p49 = scmp.eq.s32.totalorder %s20, 3
      %p50 = por %p48, %p49
      %p51 = scmp.ne.s32.totalorder %s40, %s41
      %p52 = scmp.eq.s32.totalorder %s20, 0
      %p53 = por %p51, %p52
      %p54 = scmp.ne.s32.totalorder %s40, %s41
      %p55 = scmp.eq.s32.totalorder %s21, 3
      %p56 = por %p54, %p55
      %p58 = scmp.ne.s32.totalorder %s41, %s57
      %p59 = scmp.eq.s32.totalorder %s21, 0
      %p60 = por %p58, %p59
      %s62 = sadd.s32 %s61, 1
      %p65 = scmp.eq.s32.totalorder %s15, 3
      %p66 = scmp.ne.s32.totalorder %s61, %s63
      %p67 = scmp.eq.s32.totalorder %s15, 0
      %p68 = por %p66, %p67
      %p69 = scmp.ne.s32.totalorder %s61, %s63
      %p70 = scmp.eq.s32.totalorder %s20, 3
      %p71 = por %p69, %p70
      %p72 = scmp.ne.s32.totalorder %s63, %s64
      %p73 = scmp.eq.s32.totalorder %s20, 0
      %p74 = por %p72, %p73
      %p75 = scmp.ne.s32.totalorder %s63, %s64
      %p76 = scmp.eq.s32.totalorder %s21, 3
      %p77 = por %p75, %p76
      %p79 = scmp.ne.s32.totalorder %s64, %s78
      %p80 = scmp.eq.s32.totalorder %s21, 0
      %p81 = por %p79, %p80
      %s82 = ssub.s32 %s22, %s34
      %s83 = ssub.s32 %s23, %s30
      %s84 = sor.u32 %s82, %s83
      %p85 = scmp.eq.s32.totalorder %s84, 0
      %s87 = sadd.s32 %s86, 1
      %s88 = scalar_select %p85, %s86, %s87
      %p91 = pneg %p85
      %p92 = scmp.eq.s32.totalorder %s15, 3
      %p93 = por %p91, %p92
      %p94 = scmp.ne.s32.totalorder %s86, %s89
      %p95 = scmp.eq.s32.totalorder %s15, 0
      %p96 = por %p94, %p95
      %p97 = scmp.ne.s32.totalorder %s86, %s89
      %p98 = scmp.eq.s32.totalorder %s20, 3
      %p99 = por %p97, %p98
      %p100 = scmp.ne.s32.totalorder %s89, %s90
      %p101 = scmp.eq.s32.totalorder %s20, 0
      %p102 = por %p100, %p101
      %p103 = scmp.ne.s32.totalorder %s89, %s90
      %p104 = scmp.eq.s32.totalorder %s21, 3
      %p105 = por %p103, %p104
      %p107 = scmp.ne.s32.totalorder %s90, %s106
      %p108 = scmp.eq.s32.totalorder %s21, 0
      %p109 = por %p107, %p108
      %p110 = scmp.le.s32.totalorder 1, %s15
      %p111 = scmp.lt.s32.totalorder %s15, 5
      %p112 = pnand %p110, %p111
      %p113 = pneg %p112
      // Predicated region
      $region9: #{tpu_custom_call.1} parent=5 // pred_check
        _
      $region10: #{tpu_custom_call.1} parent=5 // pred_check_branch
        %115 = sbr.rel (%p112) target = $region12
      $region11: #{tpu_custom_call.1} parent=5 // pred_region
        %s116 = ssub.s32 %s15, 1
        // Predicated region
        $region13: #{tpu_custom_call.1} parent=11 // pred_check
          %p117 = pneg %p74
        $region14: #{tpu_custom_call.1} parent=11 // pred_check_branch
          %119 = sbr.rel (%p117) target = $region16
        $region15: #{tpu_custom_call.1} parent=11 // pred_region
          %121 = vsyncadd [#allocation6], 0
          %s123 = sshll.u32 %s1, 4
          %s124 = int_to_ptr.hbm [resolvable:$true] %s123
          %s125 = sshll.u32 [#allocation5], 4
          %s126 = int_to_ptr.vmem [resolvable:$true] %s125
          %128 = dma.hbm_to_vmem [thread:$0]  %s124, 128, %s126, [#allocation6]
        $region16: #{tpu_custom_call.1} parent=11 // pred_fallthru
          _
      $region12: #{tpu_custom_call.1} parent=5 // pred_fallthru
        _
      %p129 = scmp.lt.s32.totalorder %s15, 4
      // Predicated region
      $region17: #{tpu_custom_call.1} parent=5 // pred_check
        %p130 = pneg %p129
      $region18: #{tpu_custom_call.1} parent=5 // pred_check_branch
        %132 = sbr.rel (%p130) target = $region20
      $region19: #{tpu_custom_call.1} parent=5 // pred_region
        // Predicated region
        $region21: #{tpu_custom_call.1} parent=19 // pred_check
          %p133 = pneg %p47
        $region22: #{tpu_custom_call.1} parent=19 // pred_check_branch
          %135 = sbr.rel (%p133) target = $region24
        $region23: #{tpu_custom_call.1} parent=19 // pred_region
          %s136 = sand.u32 %s37, 1
          %s137 = scalar_lea.sflag [#allocation3], %s136
          %s138 = sand.u32 %s37, 1
          %s139 = smul.addr %s138, 24
          %s140 = scalar_lea.vmem [#allocation2], %s139
          %142 = vsyncadd %s137, 0
          %s143 = smul.addr %s22, 3
          %s144 = smul.addr %s143, 8
          %s145 = scalar_lea.hbm %s0, %s144
          %s147 = sshll.u32 %s145, 4
          %s148 = int_to_ptr.hbm [resolvable:$true] %s147
          %s149 = sshll.u32 %s140, 4
          %s150 = int_to_ptr.vmem [resolvable:$true] %s149
          %152 = dma.hbm_to_vmem [thread:$0]  %s148, 384, %s150, %s137
        $region24: #{tpu_custom_call.1} parent=19 // pred_fallthru
          _
      $region20: #{tpu_custom_call.1} parent=5 // pred_fallthru
        _
      %p153 = scmp.le.s32.totalorder 1, %s15
      %p154 = scmp.lt.s32.totalorder %s15, 5
      %p155 = pnand %p153, %p154
      %p156 = pneg %p155
      // Predicated region
      $region25: #{tpu_custom_call.1} parent=5 // pred_check
        _
      $region26: #{tpu_custom_call.1} parent=5 // pred_check_branch
        %158 = sbr.rel (%p155) target = $region28
      $region27: #{tpu_custom_call.1} parent=5 // pred_region
        %s159 = ssub.s32 %s15, 1
        %s160 = sand.u32 %s40, 1
        %s161 = scalar_lea.sflag [#allocation3], %s160
        %s162 = sand.u32 %s40, 1
        %s163 = smul.addr %s162, 24
        %s164 = scalar_lea.vmem [#allocation2], %s163
        // Predicated region
        $region29: #{tpu_custom_call.1} parent=27 // pred_check
          %p165 = pneg %p53
        $region30: #{tpu_custom_call.1} parent=27 // pred_check_branch
          %167 = sbr.rel (%p165) target = $region32
        $region31: #{tpu_custom_call.1} parent=27 // pred_region
          %169 = dma.done %s161, 384
        $region32: #{tpu_custom_call.1} parent=27 // pred_fallthru
          _
        // Predicated region
        $region33: #{tpu_custom_call.1} parent=27 // pred_check
          %p170 = pneg %p74
        $region34: #{tpu_custom_call.1} parent=27 // pred_check_branch
          %172 = sbr.rel (%p170) target = $region36
        $region35: #{tpu_custom_call.1} parent=27 // pred_region
          %174 = dma.done [#allocation6], 128
        $region36: #{tpu_custom_call.1} parent=27 // pred_fallthru
          _
        %s175 = sand.u32 %s40, 1
        %s176 = scalar_lea.sflag [#allocation3], %s175
        %s177 = sand.u32 %s40, 1
        %s178 = smul.addr %s177, 24
        %s179 = scalar_lea.vmem [#allocation2], %s178
        %p180 = pneg %p53
        %p181 = pneg %p50
        %p182 = pneg %p74
        %p183 = pneg %p71
        %p184 = pneg %p102
        %p185 = pneg %p99
        %s186 = sand.u32 %s89, 1
        %s187 = scalar_lea.sflag [#allocation4], %s186
        %s188 = sand.u32 %s89, 1
        %s189 = smul.addr %s188, 8
        %s190 = scalar_lea.vmem [#allocation7], %s189
        %s191 = smul.u32 %s25, 128
        %s192 = sshra.s32 %s191, 7
        %s193 = sand.u32 %s191, 127
        %s194 = smul.addr %s192, 8
        %s195 = scalar_lea.vmem %s164, %s194 [#allocation2]
        %v196 = vld [vmem:[%s195] sm:$0xff]
        %v197 = vld [vmem:[%s195 + $0x8] sm:$0xff]
        %v198 = vlaneseq
        %v199 = vand.u32 %v198, 127
        %v200 = vstv %s191
        %v201 = vadd.s32 %v200, %v199
        %vm202 = vcmp.lt.s32.totalorder %v201, 0
        %v203 = vsub.s32 0, %v201
        %v204 = vsel %vm202, %v203, %v201
        %v205 = vshrl.u32 %v204, 4
        %v206 = vand.u32 %v204, 15
        %v207 = vsub.s32 0, %v206
        %v208 = vsel %vm202, %v207, %v206
        %vm209 = vcmp.ne.s32.totalorder %v208, 0
        %vm210 = vcmp.lt.s32.totalorder %v208, 0
        %vm211 = vmand %vm210, %vm209
        %v212 = vadd.s32 %v208, 16
        %v213 = vsel %vm211, %v212, %v208
        %vm214 = vcmp.ge.s32.totalorder %v213, 1
        %vm215 = vcmp.lt.s32.totalorder %v213, 17
        %vm216 = vmand %vm214, %vm215
        %vm217 = vcmp.ge.s32.totalorder %v213, 4294967295
        %vm218 = vcmp.lt.s32.totalorder %v213, 15
        %vm219 = vmand %vm217, %vm218
        %v220 = vsel %vm216, 1, 0
        %vm221 = vcmp.eq.s32.totalorder %v220, 1
        %v222 = vsel %vm221, %v196, 0.0
        %v223 = vsel %vm219, 1, 0
        %vm224 = vcmp.eq.s32.totalorder %v223, 1
        %227 = vrot.lane.b32.xlu0 %v196, 126
        %v228 = vpop.permute.xlu0 %227
        %229 = vrot.lane.b32.xlu0 %v197, 126
        %v230 = vpop.permute.xlu0 %229
        %vm231 = vcmask 1031168
        %v232 = vsel %vm231, %v228, %v230
        %v234 = vsel %vm224, %v232, 0.0
        %235 = vrot.lane.b32.xlu0 %v196, 112
        %v236 = vpop.permute.xlu0 %235
        %237 = vrot.lane.b32.xlu0 %v197, 112
        %v238 = vpop.permute.xlu0 %237
        %vm239 = vcmask 916480
        %v240 = vsel %vm239, %v236, %v238
        %v242 = vsel %vm221, %v240, 0.0
        %243 = vrot.lane.b32.xlu0 %v196, 110
        %v244 = vpop.permute.xlu0 %243
        %245 = vrot.lane.b32.xlu0 %v197, 110
        %v246 = vpop.permute.xlu0 %245
        %vm247 = vcmask 900096
        %v248 = vsel %vm247, %v244, %v246
        %v250 = vsel %vm224, %v248, 0.0
        %251 = vrot.lane.b32.xlu0 %v196, 96
        %v252 = vpop.permute.xlu0 %251
        %253 = vrot.lane.b32.xlu0 %v197, 96
        %v254 = vpop.permute.xlu0 %253
        %vm255 = vcmask 785408
        %v256 = vsel %vm255, %v252, %v254
        %v258 = vsel %vm221, %v256, 0.0
        %259 = vrot.lane.b32.xlu0 %v196, 94
        %v260 = vpop.permute.xlu0 %259
        %261 = vrot.lane.b32.xlu0 %v197, 94
        %v262 = vpop.permute.xlu0 %261
        %vm263 = vcmask 769024
        %v264 = vsel %vm263, %v260, %v262
        %v266 = vsel %vm224, %v264, 0.0
        %267 = vrot.lane.b32.xlu0 %v196, 127
        %v268 = vpop.permute.xlu0 %267
        %269 = vrot.lane.b32.xlu0 %v197, 127
        %v270 = vpop.permute.xlu0 %269
        %vm271 = vcmask 1039360
        %v272 = vsel %vm271, %v268, %v270
        %274 = vrot.lane.b32.xlu0 %v196, 111
        %v275 = vpop.permute.xlu0 %274
        %276 = vrot.lane.b32.xlu0 %v197, 111
        %v277 = vpop.permute.xlu0 %276
        %vm278 = vcmask 908288
        %v279 = vsel %vm278, %v275, %v277
        %281 = vrot.lane.b32.xlu0 %v196, 95
        %v282 = vpop.permute.xlu0 %281
        %283 = vrot.lane.b32.xlu0 %v197, 95
        %v284 = vpop.permute.xlu0 %283
        %vm285 = vcmask 777216
        %v286 = vsel %vm285, %v282, %v284
        %v288 = vld [vmem:[#allocation5] sm:$0xff]
        %vm289 = vcmask 588800
        %v291 = vsel %vm289, %v288, 0
        %293 = vmatpush.msra.mxu0 0.0
        %294 = vmatpush.msra.mxu0 0.0
        %295 = vmatpush.msra.mxu0 0.0
        %296 = vmatpush.msra.mxu0 0.0
        %297 = vmatpush.msra.mxu0 0.0
        %298 = vmatpush.msra.mxu0 0.0
        %299 = vmatpush.msra.mxu0 0.0
        %300 = vmatpush.msra.mxu0 %v266
        %301 = vmatpush.msra.mxu0 %v286
        %302 = vmatpush.msra.mxu0 %v258
        %303 = vmatpush.msra.mxu0 %v250
        %304 = vmatpush.msra.mxu0 %v279
        %305 = vmatpush.msra.mxu0 %v242
        %306 = vmatpush.msra.mxu0 %v234
        %307 = vmatpush.msra.mxu0 %v272
        %308 = vmatpush.msra.mxu0 %v222
        %309 = vmatmul.f32.gmra.mxu0 %v291
        %v310 = vpop.f32.mrf.mxu0
        %v311 = vadd.f32 0.0, %v310
        %312 = vdwg.mxu0
        %313 = vst [vmem:[%s190] sm:$0xff] %v311
        %s314 = sand.u32 %s89, 1
        %s315 = scalar_lea.sflag [#allocation4], %s314
        %s316 = sand.u32 %s89, 1
        %s317 = smul.addr %s316, 8
        %s318 = scalar_lea.vmem [#allocation7], %s317
        // Predicated region
        $region37: #{tpu_custom_call.1} parent=27 // pred_check
          %p319 = pneg %p99
        $region38: #{tpu_custom_call.1} parent=27 // pred_check_branch
          %321 = sbr.rel (%p319) target = $region40
        $region39: #{tpu_custom_call.1} parent=27 // pred_region
          %323 = vsyncadd %s315, 0
          %s324 = smul.addr %s24, 2
          %s325 = sadd.s32 %s25, %s324
          %s326 = smul.addr %s325, 8
          %s327 = scalar_lea.hbm %s2, %s326
          %s329 = sshll.u32 %s318, 4
          %s330 = int_to_ptr.vmem [resolvable:$true] %s329
          %s331 = sshll.u32 %s327, 4
          %s332 = int_to_ptr.hbm [resolvable:$true] %s331
          %334 = dma.vmem_to_hbm [thread:$0]  %s330, 128, %s332, %s315
        $region40: #{tpu_custom_call.1} parent=27 // pred_fallthru
          _
      $region28: #{tpu_custom_call.1} parent=5 // pred_fallthru
        _
      %p335 = scmp.le.s32.totalorder 2, %s15
      // Predicated region
      $region41: #{tpu_custom_call.1} parent=5 // pred_check
        %p336 = pneg %p335
      $region42: #{tpu_custom_call.1} parent=5 // pred_check_branch
        %338 = sbr.rel (%p336) target = $region44
      $region43: #{tpu_custom_call.1} parent=5 // pred_region
        %s339 = ssub.s32 %s15, 2
        // Predicated region
        $region45: #{tpu_custom_call.1} parent=43 // pred_check
          %p340 = pneg %p105
        $region46: #{tpu_custom_call.1} parent=43 // pred_check_branch
          %342 = sbr.rel (%p340) target = $region48
        $region47: #{tpu_custom_call.1} parent=43 // pred_region
          %s343 = sand.u32 %s90, 1
          %s344 = scalar_lea.sflag [#allocation4], %s343
          %s345 = sand.u32 %s90, 1
          %s346 = smul.addr %s345, 8
          %s347 = scalar_lea.vmem [#allocation7], %s346
          %349 = dma.done %s344, 128
        $region48: #{tpu_custom_call.1} parent=43 // pred_fallthru
          _
      $region44: #{tpu_custom_call.1} parent=5 // pred_fallthru
        _
    $region6: #{tpu_custom_call.1} parent=1 // loop_footer
      %s19 = sadd.s32 1, %s15
    $region7: #{tpu_custom_call.1} parent=1 // loop_footer_branch
      %14 = sbr.rel target = $region3
    $region8: #{tpu_custom_call.1} parent=1 // loop_exit
      _
    %350 = vsyncpa [#allocation3], 1
    %s351 = scalar_lea.sflag [#allocation3], 1
    %352 = vsyncpa %s351, 1
    %353 = vsyncpa [#allocation6], 1
    %354 = vsyncpa [#allocation4], 1
    %s355 = scalar_lea.sflag [#allocation4], 1
    %356 = vsyncpa %s355, 1

</llo_original>
